<compile_context>
chip_gen: v6e
topology: v6e:2x2x1
jax: 0.10.0
libtpu: 0.0.40
codegen_flags: <defaults>
</compile_context>

<pallas_src>
import jax
import jax.numpy as jnp
from jax.experimental import pallas as pl
from jax.experimental.pallas import tpu as pltpu


def _round_up(x: int, m: int) -> int:
    return (x + m - 1) // m * m


def attention_pooling_kernel(x_ref, q_ref, o_ref):
    # x_ref: (BB, T, Ep) block of batch rows       (Ep = E padded to 128 lanes)
    # q_ref: (1, Ep) lane-dense query row
    # o_ref: (BB, Ep) pooled output block
    x = x_ref[...].astype(jnp.float32)          # (BB, T, Ep)
    q = q_ref[...].astype(jnp.float32)          # (1, Ep)

    # attention scores: sum_E (x * q)  -> (BB, T)   (VPU multiply + lane reduce)
    scores = jnp.sum(x * q[None, :, :], axis=-1)

    # numerically stable softmax over the sequence axis T
    m = jnp.max(scores, axis=-1, keepdims=True)             # (BB, 1)
    p = jnp.exp(scores - m)                                  # (BB, T)
    denom = jnp.sum(p, axis=-1, keepdims=True)               # (BB, 1)
    w = p * pl.reciprocal(denom, approx=True)                # (BB, T)

    # weighted average over T: sum_T (w * x) -> (BB, Ep)
    # (VPU multiply + sublane reduce; avoids an M=1 MXU matmul)
    out = jnp.sum(w[:, :, None] * x, axis=1)
    o_ref[...] = out.astype(o_ref.dtype)


def attention_pooling(input_tensors: jax.Array, query: jax.Array,
                      *, block_b: int | None = None) -> jax.Array:
    """input_tensors: (B, T, E), query: (E, 1) -> (B, E)."""
    b, t, e = input_tensors.shape
    assert query.shape == (e, 1), f"query must be ({e}, 1), got {query.shape}"

    itemsize = jnp.dtype(input_tensors.dtype).itemsize

    # Lane-dense layout: pad E up to a multiple of 128 (padded cols are zero and
    # do not change scores or the kept output columns).
    e_pad = _round_up(e, 128)

    # Batch block size: multiple of 8 sublanes, sized so a double-buffered input
    # tile stays well under the smallest (v7x, 64 MiB) VMEM.
    if block_b is None:
        per_buffer_budget = 8 << 20                       # 8 MiB per input buffer
        bb = per_buffer_budget // max(1, t * e_pad * itemsize)
        bb = max(8, (bb // 8) * 8)
    else:
        bb = max(8, (block_b // 8) * 8)
    # Keep >=2 grid steps when the batch allows it (megacore on v7x).
    while bb > 8 and pl.cdiv(b, bb) < 2:
        bb = max(8, (bb // 2) // 8 * 8)
    b_pad = pl.cdiv(b, bb) * bb

    x = input_tensors
    if b_pad != b or e_pad != e:
        x = jnp.pad(x, ((0, b_pad - b), (0, 0), (0, e_pad - e)))
    q_row = query.reshape(1, e)
    if e_pad != e:
        q_row = jnp.pad(q_row, ((0, 0), (0, e_pad - e)))

    # Explicit VMEM budget: 2x double-buffered input tiles + output/query + slack.
    tile_bytes = bb * t * e_pad * itemsize
    vmem_limit = max(16 << 20, min(4 * tile_bytes + (4 << 20), 48 << 20))

    out_padded = pl.pallas_call(
        attention_pooling_kernel,
        out_shape=jax.ShapeDtypeStruct((b_pad, e_pad), input_tensors.dtype),
        grid_spec=pltpu.PrefetchScalarGridSpec(
            num_scalar_prefetch=0,
            grid=(b_pad // bb,),
            in_specs=[
                # BB batch rows per grid step; full T and (padded) E extents.
                pl.BlockSpec((bb, t, e_pad), lambda i: (i, 0, 0)),
                # Whole query row, identical for every grid step.
                pl.BlockSpec((1, e_pad), lambda i: (0, 0)),
            ],
            out_specs=pl.BlockSpec((bb, e_pad), lambda i: (i, 0)),
        ),
        compiler_params=pltpu.CompilerParams(
            dimension_semantics=("parallel",),
            vmem_limit_bytes=vmem_limit,
        ),
    )(x, q_row)

    return out_padded[:b, :e]
    # TODO(synk): for very long T (tile > VMEM budget) add a second "arbitrary"
    # grid axis over T with an online-softmax accumulator; not needed at these shapes.


def reference_attention_pooling(x: jax.Array, q: jax.Array) -> jax.Array:
    scores = jnp.squeeze(jnp.matmul(x, q), axis=-1)            # (B, T)
    w = jax.nn.softmax(scores, axis=1)[..., None]              # (B, T, 1)
    out = jnp.matmul(jnp.swapaxes(w, 1, 2), x)                 # (B, 1, E)
    return out.reshape(out.shape[0], out.shape[1] * out.shape[2])


if __name__ == "__main__":
    B, T, E = 2, 8, 32

    key = jax.random.PRNGKey(0)
    kx, kq = jax.random.split(key)

    x = jax.random.normal(kx, (B, T, E), dtype=jnp.float32)

    # Deterministic xavier_normal_-style init for query of shape (E, 1):
    # std = sqrt(2 / (fan_in + fan_out)) = sqrt(2 / (E + 1))
    xavier_std = (2.0 / (E + 1)) ** 0.5
    query = xavier_std * jax.random.normal(kq, (E, 1), dtype=jnp.float32)

    out = attention_pooling(x, query)
    out = jax.block_until_ready(out)

    ref = reference_attention_pooling(x, query)
    assert out.shape == (B, E), out.shape
    # Tolerance accounts for the approximate (EUP) reciprocal in the softmax.
    assert jnp.allclose(out, ref, atol=2e-3, rtol=2e-3), "mismatch vs reference"

    print("KERNEL_OK")
</pallas_src>

<mosaic_0001>
module attributes {stable_mosaic.version = 11 : i64} {
  func.func @attention_pooling_kernel(%arg0: i32, %arg1: memref<8x8x128xf32, #tpu.memory_space<vmem>>, %arg2: memref<1x128xf32, #tpu.memory_space<vmem>>, %arg3: memref<8x128xf32, #tpu.memory_space<vmem>>) attributes {dimension_semantics = [#tpu.dimension_semantics<parallel>], iteration_bounds = array<i64: 1>, scalar_prefetch = 0 : i64, scratch_operands = 0 : i64, tpu.core_type = #tpu.core_type<tc>, window_params = [{transform_indices = @transform_0, window_bounds = array<i64: 8, 8, 128>}, {pipeline_mode = #tpu.pipeline_mode<synchronous>, transform_indices = @transform_1, window_bounds = array<i64: 1, 128>}, {transform_indices = @transform_2, window_bounds = array<i64: 8, 128>}]} {
    %c0 = arith.constant 0 : index
    %c0_0 = arith.constant 0 : index
    %c0_1 = arith.constant 0 : index
    %0 = vector.load %arg1[%c0, %c0_0, %c0_1] : memref<8x8x128xf32, #tpu.memory_space<vmem>>, vector<8x8x128xf32>
    %c0_2 = arith.constant 0 : index
    %c0_3 = arith.constant 0 : index
    %1 = vector.load %arg2[%c0_2, %c0_3] : memref<1x128xf32, #tpu.memory_space<vmem>>, vector<1x128xf32>
    %2 = vector.shape_cast %1 : vector<1x128xf32> to vector<1x1x128xf32>
    %3 = vector.broadcast %2 : vector<1x1x128xf32> to vector<8x8x128xf32>
    %4 = arith.mulf %0, %3 : vector<8x8x128xf32>
    %cst = arith.constant dense<0.000000e+00> : vector<8x8xf32>
    %5 = vector.multi_reduction <add>, %4, %cst [2] : vector<8x8x128xf32> to vector<8x8xf32>
    %cst_4 = arith.constant dense<0xFF800000> : vector<8xf32>
    %6 = vector.multi_reduction <maximumf>, %5, %cst_4 [1] : vector<8x8xf32> to vector<8xf32>
    %7 = vector.shape_cast %6 : vector<8xf32> to vector<8x1xf32>
    %8 = vector.broadcast %7 : vector<8x1xf32> to vector<8x8xf32>
    %9 = arith.subf %5, %8 : vector<8x8xf32>
    %10 = math.exp %9 : vector<8x8xf32>
    %cst_5 = arith.constant dense<0.000000e+00> : vector<8xf32>
    %11 = vector.multi_reduction <add>, %10, %cst_5 [1] : vector<8x8xf32> to vector<8xf32>
    %12 = vector.shape_cast %11 : vector<8xf32> to vector<8x1xf32>
    %13 = tpu.reciprocal %12 {approx = true} : vector<8x1xf32> -> vector<8x1xf32>
    %14 = vector.broadcast %13 : vector<8x1xf32> to vector<8x8xf32>
    %15 = arith.mulf %10, %14 : vector<8x8xf32>
    %16 = vector.shape_cast %15 : vector<8x8xf32> to vector<8x8x1xf32>
    %17 = vector.broadcast %16 : vector<8x8x1xf32> to vector<8x8x128xf32>
    %18 = arith.mulf %17, %0 : vector<8x8x128xf32>
    %cst_6 = arith.constant dense<0.000000e+00> : vector<8x128xf32>
    %19 = vector.multi_reduction <add>, %18, %cst_6 [1] : vector<8x8x128xf32> to vector<8x128xf32>
    %c0_7 = arith.constant 0 : index
    %c0_8 = arith.constant 0 : index
    %20 = vector.load %arg3[%c0_7, %c0_8] : memref<8x128xf32, #tpu.memory_space<vmem>>, vector<8x128xf32>
    tpu.vector_store %arg3[%c0_7, %c0_8], %19 {strides = array<i32>} : memref<8x128xf32, #tpu.memory_space<vmem>>, vector<8x128xf32>,
    return
  }
  func.func @transform_0(%arg0: i32) -> (i32, i32, i32) {
    %c0_i32 = arith.constant 0 : i32
    %c0_i32_0 = arith.constant 0 : i32
    %c0_i32_1 = arith.constant 0 : i32
    return %arg0, %c0_i32, %c0_i32_0 : i32, i32, i32
  }
  func.func @transform_1(%arg0: i32) -> (i32, i32) {
    %c0_i32 = arith.constant 0 : i32
    %c0_i32_0 = arith.constant 0 : i32
    %c0_i32_1 = arith.constant 0 : i32
    return %c0_i32, %c0_i32_0 : i32, i32
  }
  func.func @transform_2(%arg0: i32) -> (i32, i32) {
    %c0_i32 = arith.constant 0 : i32
    %c0_i32_0 = arith.constant 0 : i32
    return %arg0, %c0_i32 : i32, i32
  }
}

</mosaic_0001>

<llo_original>
// kernel: tpu_custom_call.1
$region0: #{tpu_custom_call.1}
  #allocation0 [shape = 'u32[]', space=smem, size = 0x4, offset = 0x4, fixed_abs, tag = 'smem constant byte address 0x4 - core index']
  #allocation1 [shape = 'u32[144,128]{1,0:T(1,128)}', space=vmem, size = 0x12000, scoped, tag = 'internal scratch']
  %s0 = inlined_call_operand.hbm [shape: f32[8,8,128], index: 0, kind: input, shape index: {}]
  %s1 = inlined_call_operand.vmem [shape: f32[1,128], index: 1, kind: input, shape index: {}]
  %s2 = inlined_call_operand.hbm [shape: f32[8,128], index: 2, kind: output, shape index: {}]
  %s3 = sld [smem:[#allocation0]]
  $region22: #{tpu_custom_call.1} parent=0
    _
  %s5 = ssub.s32 1, %s3
  %s6 = scalar_select 0, %s5, %s3
  $region1: #{tpu_custom_call.1} parent=0
    #allocation2 [shape = 'u8[32768]{0}', space=vmem, size = 0x8000, scoped, tag = 'input window, operand 0, single buffered']
    #allocation3 [shape = 's32[1]{0}', space=sflag, size = 0x4, scoped, tag = 'scoped memory for tpu_custom_call.1']
    #allocation4 [shape = 's32[1]{0}', space=sflag, size = 0x4, scoped, tag = 'scoped memory for tpu_custom_call.1']
    #allocation5 [shape = 'u8[4096]{0}', space=vmem, size = 0x1000, scoped, tag = 'output window, operand 0, single buffered']
    %7 = vsyncpa [#allocation3], 0
    %8 = vsyncpa [#allocation4], 0
    // Predicated region
    $region2: #{tpu_custom_call.1} parent=1 // pred_check
      _
    $region3: #{tpu_custom_call.1} parent=1 // pred_check_branch
      %10 = sbr.rel (0) target = $region5
    $region4: #{tpu_custom_call.1} parent=1 // pred_region
      %s12 = ssub.s32 1024, 1024
      %13 = vsyncadd [#allocation3], %s12
      %s14 = sshll.u32 [#allocation2], 4
      %s15 = int_to_ptr.vmem [resolvable:$true] %s14
      %20 = dma.hbm_to_vmem [thread:$0]  %s0, 1024, %s15, [#allocation3], 128, 128, 8
    $region5: #{tpu_custom_call.1} parent=1 // pred_fallthru
      _
    // Predicated region
    $region6: #{tpu_custom_call.1} parent=1 // pred_check
      _
    $region7: #{tpu_custom_call.1} parent=1 // pred_check_branch
      %22 = sbr.rel (0) target = $region9
    $region8: #{tpu_custom_call.1} parent=1 // pred_region
      _
    $region9: #{tpu_custom_call.1} parent=1 // pred_fallthru
      _
    // Predicated region
    $region10: #{tpu_custom_call.1} parent=1 // pred_check
      _
    $region11: #{tpu_custom_call.1} parent=1 // pred_check_branch
      %24 = sbr.rel (0) target = $region13
    $region12: #{tpu_custom_call.1} parent=1 // pred_region
      %25 = dma.done [#allocation3], 1024
    $region13: #{tpu_custom_call.1} parent=1 // pred_fallthru
      _
    %v26 = vld [vmem:[#allocation2] sm:$0xff]
    %v27 = vld [vmem:[#allocation2 + $0x8] sm:$0xff]
    %v28 = vld [vmem:[#allocation2 + $0x10] sm:$0xff]
    %v29 = vld [vmem:[#allocation2 + $0x18] sm:$0xff]
    %v30 = vld [vmem:[#allocation2 + $0x20] sm:$0xff]
    %v31 = vld [vmem:[#allocation2 + $0x28] sm:$0xff]
    %v32 = vld [vmem:[#allocation2 + $0x30] sm:$0xff]
    %v33 = vld [vmem:[#allocation2 + $0x38] sm:$0xff]
    %v34 = vld [vmem:[%s1] sm:$0x1]
    %v36 = vlaneseq
    %v37 = vshrl.u32 %v36, 7
    %v38 = vsub.s32 0, %v37
    %v39 = vrot.slane %v34, %v38
    %v41 = vmul.f32 %v26, %v39
    %v42 = vmul.f32 %v27, %v39
    %v43 = vmul.f32 %v28, %v39
    %v44 = vmul.f32 %v29, %v39
    %v45 = vmul.f32 %v30, %v39
    %v46 = vmul.f32 %v31, %v39
    %v47 = vmul.f32 %v32, %v39
    %v48 = vmul.f32 %v33, %v39
    %49 = vadd.xlane.f32.xlu0 %v41
    %v50 = vpop.xlane.xlu0 %49
    %51 = vadd.xlane.f32.xlu0 %v42
    %v52 = vpop.xlane.xlu0 %51
    %53 = vadd.xlane.f32.xlu0 %v43
    %v54 = vpop.xlane.xlu0 %53
    %55 = vadd.xlane.f32.xlu0 %v44
    %v56 = vpop.xlane.xlu0 %55
    %57 = vadd.xlane.f32.xlu0 %v45
    %v58 = vpop.xlane.xlu0 %57
    %59 = vadd.xlane.f32.xlu0 %v46
    %v60 = vpop.xlane.xlu0 %59
    %61 = vadd.xlane.f32.xlu0 %v47
    %v62 = vpop.xlane.xlu0 %61
    %63 = vadd.xlane.f32.xlu0 %v48
    %v64 = vpop.xlane.xlu0 %63
    %v73 = vlaneseq
    %v74 = vand.u32 %v73, 127
    %v75 = vlaneseq
    %v76 = vshrl.u32 %v75, 7
    %v77 = vsub.s32 %v74, %v76
    %v78 = vrot.slane %v50, %v77
    %v79 = vlaneseq
    %v80 = vshrl.u32 %v79, 7
    %v81 = vsub.s32 %v74, %v80
    %v82 = vrot.slane %v52, %v81
    %v83 = vlaneseq
    %v84 = vshrl.u32 %v83, 7
    %v85 = vsub.s32 %v74, %v84
    %v86 = vrot.slane %v54, %v85
    %v87 = vlaneseq
    %v88 = vshrl.u32 %v87, 7
    %v89 = vsub.s32 %v74, %v88
    %v90 = vrot.slane %v56, %v89
    %v91 = vlaneseq
    %v92 = vshrl.u32 %v91, 7
    %v93 = vsub.s32 %v74, %v92
    %v94 = vrot.slane %v58, %v93
    %v95 = vlaneseq
    %v96 = vshrl.u32 %v95, 7
    %v97 = vsub.s32 %v74, %v96
    %v98 = vrot.slane %v60, %v97
    %v99 = vlaneseq
    %v100 = vshrl.u32 %v99, 7
    %v101 = vsub.s32 %v74, %v100
    %v102 = vrot.slane %v62, %v101
    %v103 = vlaneseq
    %v104 = vshrl.u32 %v103, 7
    %v105 = vsub.s32 %v74, %v104
    %v106 = vrot.slane %v64, %v105
    %vm107 = vcmask 1041409
    %v108 = vsel %vm107, %v82, %v78
    %vm109 = vcmask 1042434
    %v110 = vsel %vm109, %v86, %v108
    %vm111 = vcmask 1043459
    %v112 = vsel %vm111, %v90, %v110
    %vm113 = vcmask 1044484
    %v114 = vsel %vm113, %v94, %v112
    %vm115 = vcmask 1045509
    %v116 = vsel %vm115, %v98, %v114
    %vm117 = vcmask 1046534
    %v118 = vsel %vm117, %v102, %v116
    %vm119 = vcmask 1047559
    %v120 = vsel %vm119, %v106, %v118
    %vm122 = vcmask 64512
    %v123 = vsel %vm122, %v120, -inf
    %124 = vmax.xlane.f32.xlu0 %v123
    %v125 = vpop.xlane.xlu0 %124
    %v127 = vlaneseq
    %v128 = vshrl.u32 %v127, 7
    %v129 = vsub.s32 0, %v128
    %v130 = vrot.slane %v125, %v129
    %v131 = vlaneseq
    %v132 = vshrl.u32 %v131, 7
    %v133 = vsub.s32 1, %v132
    %v134 = vrot.slane %v125, %v133
    %v135 = vlaneseq
    %v136 = vshrl.u32 %v135, 7
    %v137 = vsub.s32 2, %v136
    %v138 = vrot.slane %v125, %v137
    %v139 = vlaneseq
    %v140 = vshrl.u32 %v139, 7
    %v141 = vsub.s32 3, %v140
    %v142 = vrot.slane %v125, %v141
    %v143 = vlaneseq
    %v144 = vshrl.u32 %v143, 7
    %v145 = vsub.s32 4, %v144
    %v146 = vrot.slane %v125, %v145
    %v147 = vlaneseq
    %v148 = vshrl.u32 %v147, 7
    %v149 = vsub.s32 5, %v148
    %v150 = vrot.slane %v125, %v149
    %v151 = vlaneseq
    %v152 = vshrl.u32 %v151, 7
    %v153 = vsub.s32 6, %v152
    %v154 = vrot.slane %v125, %v153
    %v155 = vlaneseq
    %v156 = vshrl.u32 %v155, 7
    %v157 = vsub.s32 7, %v156
    %v158 = vrot.slane %v125, %v157
    %v167 = vsub.f32 %v50, %v130
    %v168 = vsub.f32 %v52, %v134
    %v169 = vsub.f32 %v54, %v138
    %v170 = vsub.f32 %v56, %v142
    %v171 = vsub.f32 %v58, %v146
    %v172 = vsub.f32 %v60, %v150
    %v173 = vsub.f32 %v62, %v154
    %v174 = vsub.f32 %v64, %v158
    %v175 = vmul.f32 %v167, 1.442695
    %v176 = vpow.pop %v175
    %v177 = vmul.f32 %v168, 1.442695
    %v178 = vpow.pop %v177
    %v179 = vmul.f32 %v169, 1.442695
    %v180 = vpow.pop %v179
    %v181 = vmul.f32 %v170, 1.442695
    %v182 = vpow.pop %v181
    %v183 = vmul.f32 %v171, 1.442695
    %v184 = vpow.pop %v183
    %v185 = vmul.f32 %v172, 1.442695
    %v186 = vpow.pop %v185
    %v187 = vmul.f32 %v173, 1.442695
    %v188 = vpow.pop %v187
    %v189 = vmul.f32 %v174, 1.442695
    %v190 = vpow.pop %v189
    %199 = vset.pattern.permute.xlu0 0
    %200 = vperm.xlu0 %199, %v176
    %v201 = vpop.permute.xlu0 %200
    %202 = vset.pattern.permute.xlu0 0
    %203 = vperm.xlu0 %202, %v178
    %v204 = vpop.permute.xlu0 %203
    %205 = vset.pattern.permute.xlu0 0
    %206 = vperm.xlu0 %205, %v180
    %v207 = vpop.permute.xlu0 %206
    %208 = vset.pattern.permute.xlu0 0
    %209 = vperm.xlu0 %208, %v182
    %v210 = vpop.permute.xlu0 %209
    %211 = vset.pattern.permute.xlu0 0
    %212 = vperm.xlu0 %211, %v184
    %v213 = vpop.permute.xlu0 %212
    %214 = vset.pattern.permute.xlu0 0
    %215 = vperm.xlu0 %214, %v186
    %v216 = vpop.permute.xlu0 %215
    %217 = vset.pattern.permute.xlu0 0
    %218 = vperm.xlu0 %217, %v188
    %v219 = vpop.permute.xlu0 %218
    %220 = vset.pattern.permute.xlu0 0
    %221 = vperm.xlu0 %220, %v190
    %v222 = vpop.permute.xlu0 %221
    %v223 = vlaneseq
    %v224 = vshrl.u32 %v223, 7
    %v225 = vsub.s32 %v74, %v224
    %v226 = vrot.slane %v201, %v225
    %v227 = vlaneseq
    %v228 = vshrl.u32 %v227, 7
    %v229 = vsub.s32 %v74, %v228
    %v230 = vrot.slane %v204, %v229
    %v231 = vlaneseq
    %v232 = vshrl.u32 %v231, 7
    %v233 = vsub.s32 %v74, %v232
    %v234 = vrot.slane %v207, %v233
    %v235 = vlaneseq
    %v236 = vshrl.u32 %v235, 7
    %v237 = vsub.s32 %v74, %v236
    %v238 = vrot.slane %v210, %v237
    %v239 = vlaneseq
    %v240 = vshrl.u32 %v239, 7
    %v241 = vsub.s32 %v74, %v240
    %v242 = vrot.slane %v213, %v241
    %v243 = vlaneseq
    %v244 = vshrl.u32 %v243, 7
    %v245 = vsub.s32 %v74, %v244
    %v246 = vrot.slane %v216, %v245
    %v247 = vlaneseq
    %v248 = vshrl.u32 %v247, 7
    %v249 = vsub.s32 %v74, %v248
    %v250 = vrot.slane %v219, %v249
    %v251 = vlaneseq
    %v252 = vshrl.u32 %v251, 7
    %v253 = vsub.s32 %v74, %v252
    %v254 = vrot.slane %v222, %v253
    %v255 = vsel %vm107, %v230, %v226
    %v256 = vsel %vm109, %v234, %v255
    %v257 = vsel %vm111, %v238, %v256
    %v258 = vsel %vm113, %v242, %v257
    %v259 = vsel %vm115, %v246, %v258
    %v260 = vsel %vm117, %v250, %v259
    %v261 = vsel %vm119, %v254, %v260
    %v263 = vsel %vm122, %v261, 0.0
    %264 = vadd.xlane.f32.xlu0 %v263
    %v265 = vpop.xlane.xlu0 %264
    %v266 = vrcp.pop %v265
    %v268 = vlaneseq
    %v269 = vshrl.u32 %v268, 7
    %v270 = vsub.s32 0, %v269
    %v271 = vrot.slane %v266, %v270
    %v272 = vlaneseq
    %v273 = vshrl.u32 %v272, 7
    %v274 = vsub.s32 1, %v273
    %v275 = vrot.slane %v266, %v274
    %v276 = vlaneseq
    %v277 = vshrl.u32 %v276, 7
    %v278 = vsub.s32 2, %v277
    %v279 = vrot.slane %v266, %v278
    %v280 = vlaneseq
    %v281 = vshrl.u32 %v280, 7
    %v282 = vsub.s32 3, %v281
    %v283 = vrot.slane %v266, %v282
    %v284 = vlaneseq
    %v285 = vshrl.u32 %v284, 7
    %v286 = vsub.s32 4, %v285
    %v287 = vrot.slane %v266, %v286
    %v288 = vlaneseq
    %v289 = vshrl.u32 %v288, 7
    %v290 = vsub.s32 5, %v289
    %v291 = vrot.slane %v266, %v290
    %v292 = vlaneseq
    %v293 = vshrl.u32 %v292, 7
    %v294 = vsub.s32 6, %v293
    %v295 = vrot.slane %v266, %v294
    %v296 = vlaneseq
    %v297 = vshrl.u32 %v296, 7
    %v298 = vsub.s32 7, %v297
    %v299 = vrot.slane %v266, %v298
    %v308 = vmul.f32 %v176, %v271
    %v309 = vmul.f32 %v178, %v275
    %v310 = vmul.f32 %v180, %v279
    %v311 = vmul.f32 %v182, %v283
    %v312 = vmul.f32 %v184, %v287
    %v313 = vmul.f32 %v186, %v291
    %v314 = vmul.f32 %v188, %v295
    %v315 = vmul.f32 %v190, %v299
    %317 = vset.pattern.permute.xlu0 0
    %318 = vperm.xlu0 %317, %v308
    %v319 = vpop.permute.xlu0 %318
    %322 = vset.pattern.permute.xlu0 0
    %323 = vperm.xlu0 %322, %v309
    %v324 = vpop.permute.xlu0 %323
    %327 = vset.pattern.permute.xlu0 0
    %328 = vperm.xlu0 %327, %v310
    %v329 = vpop.permute.xlu0 %328
    %332 = vset.pattern.permute.xlu0 0
    %333 = vperm.xlu0 %332, %v311
    %v334 = vpop.permute.xlu0 %333
    %337 = vset.pattern.permute.xlu0 0
    %338 = vperm.xlu0 %337, %v312
    %v339 = vpop.permute.xlu0 %338
    %342 = vset.pattern.permute.xlu0 0
    %343 = vperm.xlu0 %342, %v313
    %v344 = vpop.permute.xlu0 %343
    %347 = vset.pattern.permute.xlu0 0
    %348 = vperm.xlu0 %347, %v314
    %v349 = vpop.permute.xlu0 %348
    %352 = vset.pattern.permute.xlu0 0
    %353 = vperm.xlu0 %352, %v315
    %v354 = vpop.permute.xlu0 %353
    %v356 = vmul.f32 %v319, %v26
    %v357 = vmul.f32 %v324, %v27
    %v358 = vmul.f32 %v329, %v28
    %v359 = vmul.f32 %v334, %v29
    %v360 = vmul.f32 %v339, %v30
    %v361 = vmul.f32 %v344, %v31
    %v362 = vmul.f32 %v349, %v32
    %v363 = vmul.f32 %v354, %v33
    %v364 = vrot.slane %v356, 4
    %v365 = vadd.f32 %v356, %v364
    %v366 = vrot.slane %v365, 2
    %v367 = vadd.f32 %v365, %v366
    %v368 = vrot.slane %v367, 1
    %v369 = vadd.f32 %v367, %v368
    %v370 = vrot.slane %v357, 4
    %v371 = vadd.f32 %v357, %v370
    %v372 = vrot.slane %v371, 2
    %v373 = vadd.f32 %v371, %v372
    %v374 = vrot.slane %v373, 1
    %v375 = vadd.f32 %v373, %v374
    %v376 = vrot.slane %v358, 4
    %v377 = vadd.f32 %v358, %v376
    %v378 = vrot.slane %v377, 2
    %v379 = vadd.f32 %v377, %v378
    %v380 = vrot.slane %v379, 1
    %v381 = vadd.f32 %v379, %v380
    %v382 = vrot.slane %v359, 4
    %v383 = vadd.f32 %v359, %v382
    %v384 = vrot.slane %v383, 2
    %v385 = vadd.f32 %v383, %v384
    %v386 = vrot.slane %v385, 1
    %v387 = vadd.f32 %v385, %v386
    %v388 = vrot.slane %v360, 4
    %v389 = vadd.f32 %v360, %v388
    %v390 = vrot.slane %v389, 2
    %v391 = vadd.f32 %v389, %v390
    %v392 = vrot.slane %v391, 1
    %v393 = vadd.f32 %v391, %v392
    %v394 = vrot.slane %v361, 4
    %v395 = vadd.f32 %v361, %v394
    %v396 = vrot.slane %v395, 2
    %v397 = vadd.f32 %v395, %v396
    %v398 = vrot.slane %v397, 1
    %v399 = vadd.f32 %v397, %v398
    %v400 = vrot.slane %v362, 4
    %v401 = vadd.f32 %v362, %v400
    %v402 = vrot.slane %v401, 2
    %v403 = vadd.f32 %v401, %v402
    %v404 = vrot.slane %v403, 1
    %v405 = vadd.f32 %v403, %v404
    %v406 = vrot.slane %v363, 4
    %v407 = vadd.f32 %v363, %v406
    %v408 = vrot.slane %v407, 2
    %v409 = vadd.f32 %v407, %v408
    %v410 = vrot.slane %v409, 1
    %v411 = vadd.f32 %v409, %v410
    %v420 = vsel %vm107, %v375, %v369
    %v421 = vsel %vm109, %v381, %v420
    %v422 = vsel %vm111, %v387, %v421
    %v423 = vsel %vm113, %v393, %v422
    %v424 = vsel %vm115, %v399, %v423
    %v425 = vsel %vm117, %v405, %v424
    %v426 = vsel %vm119, %v411, %v425
    %428 = vst [vmem:[#allocation5] sm:$0xff] %v426
    // Predicated region
    $region14: #{tpu_custom_call.1} parent=1 // pred_check
      _
    $region15: #{tpu_custom_call.1} parent=1 // pred_check_branch
      %430 = sbr.rel (0) target = $region17
    $region16: #{tpu_custom_call.1} parent=1 // pred_region
      %s432 = ssub.s32 128, 128
      %433 = vsyncadd [#allocation4], %s432
      %s435 = sshll.u32 [#allocation5], 4
      %s436 = int_to_ptr.vmem [resolvable:$true] %s435
      %438 = dma.vmem_to_hbm [thread:$0]  %s436, 128, %s2, [#allocation4]
    $region17: #{tpu_custom_call.1} parent=1 // pred_fallthru
      _
    // Predicated region
    $region18: #{tpu_custom_call.1} parent=1 // pred_check
      _
    $region19: #{tpu_custom_call.1} parent=1 // pred_check_branch
      %440 = sbr.rel (0) target = $region21
    $region20: #{tpu_custom_call.1} parent=1 // pred_region
      %441 = dma.done [#allocation4], 128
    $region21: #{tpu_custom_call.1} parent=1 // pred_fallthru
      _
    %442 = vsyncpa [#allocation3], 1
    %443 = vsyncpa [#allocation4], 1

</llo_original>
